<compile_context>
chip_gen: v7x
topology: tpu7x:2x2x1
jax: 0.10.0
libtpu: 0.0.40
codegen_flags: <defaults>
</compile_context>

<pallas_src>
import functools

import jax
import jax.numpy as jnp
from jax import lax
from jax.experimental import pallas as pl
from jax.experimental.pallas import tpu as pltpu


def _round_up(x, m):
    return ((x + m - 1) // m) * m


def ffnn_kernel(x_ref, w1_ref, b1_ref, w2_ref, b2_ref, o_ref, *, hidden_size, num_labels):
    # x:   (TB, V)  f32    w1t: (V, Hp)  bf16   b1: (1, Hp) f32
    # w2t: (Hp, Lp) bf16   b2:  (1, Lp)  f32    o:  (TB, Lp) f32
    x = x_ref[...].astype(jnp.bfloat16)  # cast on the VPU; HBM traffic for x stays f32 (single pass)

    # hidden = sigmoid(x @ W1^T + b1); pre-transposed weight -> ((1,),(0,)) contraction.
    z1 = lax.dot_general(
        x, w1_ref[...],
        dimension_numbers=(((1,), (0,)), ((), ())),
        preferred_element_type=jnp.float32,
    ) + b1_ref[...]
    # Single-transcendental logistic (one tanh on the EUP instead of exp + reciprocal).
    h = 0.5 * jnp.tanh(0.5 * z1) + 0.5
    if hidden_size < h.shape[-1]:
        # Explicitly zero padded hidden lanes (sigmoid(0) = 0.5) instead of relying on the
        # zero-padded rows of w2t.
        hlane = lax.broadcasted_iota(jnp.int32, h.shape, 1)
        h = jnp.where(hlane < hidden_size, h, 0.0)

    # logits = h @ W2^T + b2
    z2 = lax.dot_general(
        h.astype(w2_ref.dtype), w2_ref[...],
        dimension_numbers=(((1,), (0,)), ((), ())),
        preferred_element_type=jnp.float32,
    ) + b2_ref[...]

    if num_labels < z2.shape[-1]:
        # Mask padded label lanes so they do not perturb the log-softmax normalizer.
        lane = lax.broadcasted_iota(jnp.int32, z2.shape, 1)
        z2 = jnp.where(lane < num_labels, z2, jnp.float32(-1e30))

    # Numerically stable log_softmax over labels (last axis == PyTorch dim=1).
    m = jnp.max(z2, axis=-1, keepdims=True)
    shifted = z2 - m
    lse = jnp.log(jnp.sum(jnp.exp(shifted), axis=-1, keepdims=True))
    o_ref[...] = (shifted - lse).astype(o_ref.dtype)


def prepare_params(w1, b1, w2, b2):
    """One-time parameter prep: pad to lane multiples, transpose, cast matmul operands to bf16.

    w1: (H, V), b1: (H,), w2: (L, H), b2: (L,) in PyTorch nn.Linear layout.
    """
    H, V = w1.shape
    L = w2.shape[0]
    Hp = _round_up(H, 128)
    Lp = _round_up(L, 128)
    w1t = jnp.zeros((V, Hp), jnp.bfloat16).at[:, :H].set(w1.T.astype(jnp.bfloat16))
    w2t = jnp.zeros((Hp, Lp), jnp.bfloat16).at[:H, :L].set(w2.T.astype(jnp.bfloat16))
    b1p = jnp.zeros((1, Hp), jnp.float32).at[0, :H].set(b1.astype(jnp.float32))
    b2p = jnp.zeros((1, Lp), jnp.float32).at[0, :L].set(b2.astype(jnp.float32))
    return {"w1t": w1t, "b1": b1p, "w2t": w2t, "b2": b2p,
            "V": V, "H": H, "L": L, "Hp": Hp, "Lp": Lp}


def _vmem_capacity_bytes():
    try:
        info = pltpu.get_tpu_info()
        cap = getattr(info, "vmem_capacity_bytes", None)
        if cap:
            return int(cap)
    except Exception:
        pass
    return 128 << 20  # v5e/v6e default


def _choose_batch_tile(B):
    if B <= 32:
        return B  # single full-extent block (always a legal block shape)
    # Target large (~512-row) tiles for HBM-roofline efficiency, but keep at least two grid
    # steps so v7x's two TensorCores can both take batch tiles; multiples of 16.
    return min(512, _round_up(pl.cdiv(B, 2), 16))


def _ffnn_call(x, params, batch_tile, *, single_buffer_weights):
    B, V = x.shape
    H, L = params["H"], params["L"]
    Hp, Lp = params["Hp"], params["Lp"]
    assert V == params["V"], "vocab_size mismatch between x and prepared params"

    TB = batch_tile if batch_tile is not None else _choose_batch_tile(B)
    Bp = _round_up(B, TB)
    if Bp != B:
        # Batch-only zero pad (no dtype change); only taken when B % TB != 0.
        x = jnp.pad(x, ((0, Bp - B), (0, 0)))
    grid = (Bp // TB,)

    if single_buffer_weights:
        def resident(shape):
            # Grid-invariant operands: DMA'd once, single-buffered in VMEM.
            return pl.BlockSpec(shape, lambda i: (0,) * len(shape),
                                pipeline_mode=pl.Buffered(1))
    else:
        def resident(shape):
            return pl.BlockSpec(shape, lambda i: (0,) * len(shape))

    # Generation-aware VMEM budget: footprint-derived, capped at ~85% of this chip's VMEM.
    cap = _vmem_capacity_bytes()
    block_bytes = (
        2 * TB * (V * x.dtype.itemsize + Lp * 4)  # double-buffered x + out tiles
        + V * Hp * 2 + Hp * Lp * 2                # resident bf16 weights (single copy)
        + (Hp + Lp) * 4                           # biases
        + TB * (Hp + Lp) * 4                      # f32 intermediates (z1/h, z2)
    )
    vmem_limit = int(min(max(2 * block_bytes, 16 << 20), int(cap * 0.85)))

    return pl.pallas_call(
        functools.partial(ffnn_kernel, hidden_size=H, num_labels=L),
        out_shape=jax.ShapeDtypeStruct((Bp, Lp), jnp.float32),
        grid=grid,
        in_specs=[
            pl.BlockSpec((TB, V), lambda i: (i, 0)),  # batch-tiled activations, f32, full-extent V
            resident((V, Hp)),
            resident((1, Hp)),
            resident((Hp, Lp)),
            resident((1, Lp)),
        ],
        out_specs=pl.BlockSpec((TB, Lp), lambda i: (i, 0)),  # lane-dense 128-wide store
        compiler_params=pltpu.CompilerParams(
            dimension_semantics=("parallel",),
            vmem_limit_bytes=vmem_limit,
        ),
    )(x, params["w1t"], params["b1"], params["w2t"], params["b2"])


def feed_forward_nn(x, params, *, batch_tile=None, trim=True):
    """log_softmax(sigmoid(x @ W1^T + b1) @ W2^T + b2, dim=1) with prepared params.

    Pass trim=False to receive the padded (Bp, Lp) output block and skip the slice pass.
    """
    try:
        out = _ffnn_call(x, params, batch_tile, single_buffer_weights=True)
    except Exception:
        # Conservative fallback for JAX versions that reject pl.Buffered(1) single-buffering.
        out = _ffnn_call(x, params, batch_tile, single_buffer_weights=False)
    if trim:
        return out[: x.shape[0], : params["L"]]
    return out


def reference(x, w1, b1, w2, b2):
    h = jax.nn.sigmoid(x @ w1.T + b1)
    logits = h @ w2.T + b2
    return jax.nn.log_softmax(logits, axis=1)


if __name__ == "__main__":
    # Small shapes consistent with the module: batch=8, vocab=32, hidden=16, labels=4
    B, V, H, L = 8, 32, 16, 4

    key = jax.random.PRNGKey(0)
    kx, k1, k2, k3, k4 = jax.random.split(key, 5)

    x = jax.random.normal(kx, (B, V), dtype=jnp.float32)

    # Deterministic PyTorch-style Linear init: U(-1/sqrt(fan_in), 1/sqrt(fan_in))
    bound1 = 1.0 / jnp.sqrt(jnp.float32(V))
    w1 = jax.random.uniform(k1, (H, V), jnp.float32, -bound1, bound1)
    b1 = jax.random.uniform(k2, (H,), jnp.float32, -bound1, bound1)

    bound2 = 1.0 / jnp.sqrt(jnp.float32(H))
    w2 = jax.random.uniform(k3, (L, H), jnp.float32, -bound2, bound2)
    b2 = jax.random.uniform(k4, (L,), jnp.float32, -bound2, bound2)

    params = prepare_params(w1, b1, w2, b2)  # one-time pad / transpose / bf16 cast
    out = feed_forward_nn(x, params)
    jax.block_until_ready(out)

    ref = reference(x, w1, b1, w2, b2)
    assert out.shape == (B, L)
    # bf16 matmul operands (f32 accumulation) -> relaxed (but tight in practice) tolerance.
    assert jnp.allclose(out, ref, atol=3e-2, rtol=3e-2), float(jnp.max(jnp.abs(out - ref)))

    print("KERNEL_OK")
</pallas_src>

<mosaic_0001>
module attributes {stable_mosaic.version = 11 : i64} {
  func.func @ffnn_kernel(%arg0: i32, %arg1: memref<8x32xf32, #tpu.memory_space<vmem>>, %arg2: memref<32x128xbf16, #tpu.memory_space<vmem>>, %arg3: memref<1x128xf32, #tpu.memory_space<vmem>>, %arg4: memref<128x128xbf16, #tpu.memory_space<vmem>>, %arg5: memref<1x128xf32, #tpu.memory_space<vmem>>, %arg6: memref<8x128xf32, #tpu.memory_space<vmem>>) attributes {dimension_semantics = [#tpu.dimension_semantics<parallel>], iteration_bounds = array<i64: 1>, scalar_prefetch = 0 : i64, scratch_operands = 0 : i64, tpu.core_type = #tpu.core_type<tc>, window_params = [{transform_indices = @transform_0, window_bounds = array<i64: 8, 32>}, {pipeline_mode = #tpu.pipeline_mode<synchronous>, transform_indices = @transform_1, window_bounds = array<i64: 32, 128>}, {pipeline_mode = #tpu.pipeline_mode<synchronous>, transform_indices = @transform_2, window_bounds = array<i64: 1, 128>}, {pipeline_mode = #tpu.pipeline_mode<synchronous>, transform_indices = @transform_3, window_bounds = array<i64: 128, 128>}, {pipeline_mode = #tpu.pipeline_mode<synchronous>, transform_indices = @transform_4, window_bounds = array<i64: 1, 128>}, {transform_indices = @transform_5, window_bounds = array<i64: 8, 128>}]} {
    %c0 = arith.constant 0 : index
    %c0_0 = arith.constant 0 : index
    %0 = vector.load %arg1[%c0, %c0_0] : memref<8x32xf32, #tpu.memory_space<vmem>>, vector<8x32xf32>
    %1 = arith.truncf %0 : vector<8x32xf32> to vector<8x32xbf16>
    %c0_1 = arith.constant 0 : index
    %c0_2 = arith.constant 0 : index
    %2 = vector.load %arg2[%c0_1, %c0_2] : memref<32x128xbf16, #tpu.memory_space<vmem>>, vector<32x128xbf16>
    %cst = arith.constant dense<0.000000e+00> : vector<8x128xf32>
    %3 = tpu.matmul %1, %2, %cst {dimension_numbers = #tpu.dot_dimension_numbers<[1], [0], [0], [1], [0, 0, 1, 1], [], []>} : vector<8x32xbf16>, vector<32x128xbf16>, vector<8x128xf32> -> vector<8x128xf32>
    %c0_3 = arith.constant 0 : index
    %c0_4 = arith.constant 0 : index
    %4 = vector.load %arg3[%c0_3, %c0_4] : memref<1x128xf32, #tpu.memory_space<vmem>>, vector<1x128xf32>
    %5 = vector.broadcast %4 : vector<1x128xf32> to vector<8x128xf32>
    %6 = arith.addf %3, %5 : vector<8x128xf32>
    %cst_5 = arith.constant 5.000000e-01 : f32
    %7 = vector.broadcast %cst_5 : f32 to vector<8x128xf32>
    %8 = arith.mulf %7, %6 : vector<8x128xf32>
    %9 = math.tanh %8 : vector<8x128xf32>
    %cst_6 = arith.constant 5.000000e-01 : f32
    %10 = vector.broadcast %cst_6 : f32 to vector<8x128xf32>
    %11 = arith.mulf %10, %9 : vector<8x128xf32>
    %cst_7 = arith.constant 5.000000e-01 : f32
    %12 = vector.broadcast %cst_7 : f32 to vector<8x128xf32>
    %13 = arith.addf %11, %12 : vector<8x128xf32>
    %14 = tpu.iota {dimensions = array<i32: 1>} : vector<8x128xi32>
    %c16_i32 = arith.constant 16 : i32
    %15 = vector.broadcast %c16_i32 : i32 to vector<8x128xi32>
    %16 = arith.cmpi slt, %14, %15 : vector<8x128xi32>
    %cst_8 = arith.constant 0.000000e+00 : f32
    %17 = vector.broadcast %cst_8 : f32 to vector<8x128xf32>
    %18 = arith.select %16, %13, %17 : vector<8x128xi1>, vector<8x128xf32>
    %19 = arith.truncf %18 : vector<8x128xf32> to vector<8x128xbf16>
    %c0_9 = arith.constant 0 : index
    %c0_10 = arith.constant 0 : index
    %20 = vector.load %arg4[%c0_9, %c0_10] : memref<128x128xbf16, #tpu.memory_space<vmem>>, vector<128x128xbf16>
    %cst_11 = arith.constant dense<0.000000e+00> : vector<8x128xf32>
    %21 = tpu.matmul %19, %20, %cst_11 {dimension_numbers = #tpu.dot_dimension_numbers<[1], [0], [0], [1], [0, 0, 1, 1], [], []>} : vector<8x128xbf16>, vector<128x128xbf16>, vector<8x128xf32> -> vector<8x128xf32>
    %c0_12 = arith.constant 0 : index
    %c0_13 = arith.constant 0 : index
    %22 = vector.load %arg5[%c0_12, %c0_13] : memref<1x128xf32, #tpu.memory_space<vmem>>, vector<1x128xf32>
    %23 = vector.broadcast %22 : vector<1x128xf32> to vector<8x128xf32>
    %24 = arith.addf %21, %23 : vector<8x128xf32>
    %25 = tpu.iota {dimensions = array<i32: 1>} : vector<8x128xi32>
    %c4_i32 = arith.constant 4 : i32
    %26 = vector.broadcast %c4_i32 : i32 to vector<8x128xi32>
    %27 = arith.cmpi slt, %25, %26 : vector<8x128xi32>
    %cst_14 = arith.constant -1.000000e+30 : f32
    %28 = vector.broadcast %cst_14 : f32 to vector<8x128xf32>
    %29 = arith.select %27, %24, %28 : vector<8x128xi1>, vector<8x128xf32>
    %cst_15 = arith.constant dense<0xFF800000> : vector<8xf32>
    %30 = vector.multi_reduction <maximumf>, %29, %cst_15 [1] : vector<8x128xf32> to vector<8xf32>
    %31 = vector.shape_cast %30 : vector<8xf32> to vector<8x1xf32>
    %32 = vector.broadcast %31 : vector<8x1xf32> to vector<8x128xf32>
    %33 = arith.subf %29, %32 : vector<8x128xf32>
    %34 = math.exp %33 : vector<8x128xf32>
    %cst_16 = arith.constant dense<0.000000e+00> : vector<8xf32>
    %35 = vector.multi_reduction <add>, %34, %cst_16 [1] : vector<8x128xf32> to vector<8xf32>
    %36 = vector.shape_cast %35 : vector<8xf32> to vector<8x1xf32>
    %37 = math.log %36 : vector<8x1xf32>
    %38 = vector.broadcast %37 : vector<8x1xf32> to vector<8x128xf32>
    %39 = arith.subf %33, %38 : vector<8x128xf32>
    %c0_17 = arith.constant 0 : index
    %c0_18 = arith.constant 0 : index
    %40 = vector.load %arg6[%c0_17, %c0_18] : memref<8x128xf32, #tpu.memory_space<vmem>>, vector<8x128xf32>
    tpu.vector_store %arg6[%c0_17, %c0_18], %39 {strides = array<i32>} : memref<8x128xf32, #tpu.memory_space<vmem>>, vector<8x128xf32>,
    return
  }
  func.func @transform_0(%arg0: i32) -> (i32, i32) {
    %c0_i32 = arith.constant 0 : i32
    %c0_i32_0 = arith.constant 0 : i32
    return %arg0, %c0_i32 : i32, i32
  }
  func.func @transform_1(%arg0: i32) -> (i32, i32) {
    %c0_i32 = arith.constant 0 : i32
    %c0_i32_0 = arith.constant 0 : i32
    %c0_i32_1 = arith.constant 0 : i32
    return %c0_i32, %c0_i32_0 : i32, i32
  }
  func.func @transform_2(%arg0: i32) -> (i32, i32) {
    %c0_i32 = arith.constant 0 : i32
    %c0_i32_0 = arith.constant 0 : i32
    %c0_i32_1 = arith.constant 0 : i32
    return %c0_i32, %c0_i32_0 : i32, i32
  }
  func.func @transform_3(%arg0: i32) -> (i32, i32) {
    %c0_i32 = arith.constant 0 : i32
    %c0_i32_0 = arith.constant 0 : i32
    %c0_i32_1 = arith.constant 0 : i32
    return %c0_i32, %c0_i32_0 : i32, i32
  }
  func.func @transform_4(%arg0: i32) -> (i32, i32) {
    %c0_i32 = arith.constant 0 : i32
    %c0_i32_0 = arith.constant 0 : i32
    %c0_i32_1 = arith.constant 0 : i32
    return %c0_i32, %c0_i32_0 : i32, i32
  }
  func.func @transform_5(%arg0: i32) -> (i32, i32) {
    %c0_i32 = arith.constant 0 : i32
    %c0_i32_0 = arith.constant 0 : i32
    return %arg0, %c0_i32 : i32, i32
  }
}

module attributes {stable_mosaic.version = 11 : i64} {
  func.func @ffnn_kernel(%arg0: i32, %arg1: memref<8x32xf32, #tpu.memory_space<vmem>>, %arg2: memref<32x128xbf16, #tpu.memory_space<vmem>>, %arg3: memref<1x128xf32, #tpu.memory_space<vmem>>, %arg4: memref<128x128xbf16, #tpu.memory_space<vmem>>, %arg5: memref<1x128xf32, #tpu.memory_space<vmem>>, %arg6: memref<8x128xf32, #tpu.memory_space<vmem>>) attributes {dimension_semantics = [#tpu.dimension_semantics<parallel>], iteration_bounds = array<i64: 1>, scalar_prefetch = 0 : i64, scratch_operands = 0 : i64, tpu.core_type = #tpu.core_type<tc>, window_params = [{transform_indices = @transform_0, window_bounds = array<i64: 8, 32>}, {pipeline_mode = #tpu.pipeline_mode<synchronous>, transform_indices = @transform_1, window_bounds = array<i64: 32, 128>}, {pipeline_mode = #tpu.pipeline_mode<synchronous>, transform_indices = @transform_2, window_bounds = array<i64: 1, 128>}, {pipeline_mode = #tpu.pipeline_mode<synchronous>, transform_indices = @transform_3, window_bounds = array<i64: 128, 128>}, {pipeline_mode = #tpu.pipeline_mode<synchronous>, transform_indices = @transform_4, window_bounds = array<i64: 1, 128>}, {transform_indices = @transform_5, window_bounds = array<i64: 8, 128>}]} {
    %c0 = arith.constant 0 : index
    %c0_0 = arith.constant 0 : index
    %0 = vector.load %arg1[%c0, %c0_0] : memref<8x32xf32, #tpu.memory_space<vmem>>, vector<8x32xf32>
    %1 = arith.truncf %0 : vector<8x32xf32> to vector<8x32xbf16>
    %c0_1 = arith.constant 0 : index
    %c0_2 = arith.constant 0 : index
    %2 = vector.load %arg2[%c0_1, %c0_2] : memref<32x128xbf16, #tpu.memory_space<vmem>>, vector<32x128xbf16>
    %cst = arith.constant dense<0.000000e+00> : vector<8x128xf32>
    %3 = tpu.matmul %1, %2, %cst {dimension_numbers = #tpu.dot_dimension_numbers<[1], [0], [0], [1], [0, 0, 1, 1], [], []>} : vector<8x32xbf16>, vector<32x128xbf16>, vector<8x128xf32> -> vector<8x128xf32>
    %c0_3 = arith.constant 0 : index
    %c0_4 = arith.constant 0 : index
    %4 = vector.load %arg3[%c0_3, %c0_4] : memref<1x128xf32, #tpu.memory_space<vmem>>, vector<1x128xf32>
    %5 = vector.broadcast %4 : vector<1x128xf32> to vector<8x128xf32>
    %6 = arith.addf %3, %5 : vector<8x128xf32>
    %cst_5 = arith.constant 5.000000e-01 : f32
    %7 = vector.broadcast %cst_5 : f32 to vector<8x128xf32>
    %8 = arith.mulf %7, %6 : vector<8x128xf32>
    %9 = math.tanh %8 : vector<8x128xf32>
    %cst_6 = arith.constant 5.000000e-01 : f32
    %10 = vector.broadcast %cst_6 : f32 to vector<8x128xf32>
    %11 = arith.mulf %10, %9 : vector<8x128xf32>
    %cst_7 = arith.constant 5.000000e-01 : f32
    %12 = vector.broadcast %cst_7 : f32 to vector<8x128xf32>
    %13 = arith.addf %11, %12 : vector<8x128xf32>
    %14 = tpu.iota {dimensions = array<i32: 1>} : vector<8x128xi32>
    %c16_i32 = arith.constant 16 : i32
    %15 = vector.broadcast %c16_i32 : i32 to vector<8x128xi32>
    %16 = arith.cmpi slt, %14, %15 : vector<8x128xi32>
    %cst_8 = arith.constant 0.000000e+00 : f32
    %17 = vector.broadcast %cst_8 : f32 to vector<8x128xf32>
    %18 = arith.select %16, %13, %17 : vector<8x128xi1>, vector<8x128xf32>
    %19 = arith.truncf %18 : vector<8x128xf32> to vector<8x128xbf16>
    %c0_9 = arith.constant 0 : index
    %c0_10 = arith.constant 0 : index
    %20 = vector.load %arg4[%c0_9, %c0_10] : memref<128x128xbf16, #tpu.memory_space<vmem>>, vector<128x128xbf16>
    %cst_11 = arith.constant dense<0.000000e+00> : vector<8x128xf32>
    %21 = tpu.matmul %19, %20, %cst_11 {dimension_numbers = #tpu.dot_dimension_numbers<[1], [0], [0], [1], [0, 0, 1, 1], [], []>} : vector<8x128xbf16>, vector<128x128xbf16>, vector<8x128xf32> -> vector<8x128xf32>
    %c0_12 = arith.constant 0 : index
    %c0_13 = arith.constant 0 : index
    %22 = vector.load %arg5[%c0_12, %c0_13] : memref<1x128xf32, #tpu.memory_space<vmem>>, vector<1x128xf32>
    %23 = vector.broadcast %22 : vector<1x128xf32> to vector<8x128xf32>
    %24 = arith.addf %21, %23 : vector<8x128xf32>
    %25 = tpu.iota {dimensions = array<i32: 1>} : vector<8x128xi32>
    %c4_i32 = arith.constant 4 : i32
    %26 = vector.broadcast %c4_i32 : i32 to vector<8x128xi32>
    %27 = arith.cmpi slt, %25, %26 : vector<8x128xi32>
    %cst_14 = arith.constant -1.000000e+30 : f32
    %28 = vector.broadcast %cst_14 : f32 to vector<8x128xf32>
    %29 = arith.select %27, %24, %28 : vector<8x128xi1>, vector<8x128xf32>
    %cst_15 = arith.constant dense<0xFF800000> : vector<8xf32>
    %30 = vector.multi_reduction <maximumf>, %29, %cst_15 [1] : vector<8x128xf32> to vector<8xf32>
    %31 = vector.shape_cast %30 : vector<8xf32> to vector<8x1xf32>
    %32 = vector.broadcast %31 : vector<8x1xf32> to vector<8x128xf32>
    %33 = arith.subf %29, %32 : vector<8x128xf32>
    %34 = math.exp %33 : vector<8x128xf32>
    %cst_16 = arith.constant dense<0.000000e+00> : vector<8xf32>
    %35 = vector.multi_reduction <add>, %34, %cst_16 [1] : vector<8x128xf32> to vector<8xf32>
    %36 = vector.shape_cast %35 : vector<8xf32> to vector<8x1xf32>
    %37 = math.log %36 : vector<8x1xf32>
    %38 = vector.broadcast %37 : vector<8x1xf32> to vector<8x128xf32>
    %39 = arith.subf %33, %38 : vector<8x128xf32>
    %c0_17 = arith.constant 0 : index
    %c0_18 = arith.constant 0 : index
    %40 = vector.load %arg6[%c0_17, %c0_18] : memref<8x128xf32, #tpu.memory_space<vmem>>, vector<8x128xf32>
    tpu.vector_store %arg6[%c0_17, %c0_18], %39 {strides = array<i32>} : memref<8x128xf32, #tpu.memory_space<vmem>>, vector<8x128xf32>,
    return
  }
  func.func @transform_0(%arg0: i32) -> (i32, i32) {
    %c0_i32 = arith.constant 0 : i32
    %c0_i32_0 = arith.constant 0 : i32
    return %arg0, %c0_i32 : i32, i32
  }
  func.func @transform_1(%arg0: i32) -> (i32, i32) {
    %c0_i32 = arith.constant 0 : i32
    %c0_i32_0 = arith.constant 0 : i32
    %c0_i32_1 = arith.constant 0 : i32
    return %c0_i32, %c0_i32_0 : i32, i32
  }
  func.func @transform_2(%arg0: i32) -> (i32, i32) {
    %c0_i32 = arith.constant 0 : i32
    %c0_i32_0 = arith.constant 0 : i32
    %c0_i32_1 = arith.constant 0 : i32
    return %c0_i32, %c0_i32_0 : i32, i32
  }
  func.func @transform_3(%arg0: i32) -> (i32, i32) {
    %c0_i32 = arith.constant 0 : i32
    %c0_i32_0 = arith.constant 0 : i32
    %c0_i32_1 = arith.constant 0 : i32
    return %c0_i32, %c0_i32_0 : i32, i32
  }
  func.func @transform_4(%arg0: i32) -> (i32, i32) {
    %c0_i32 = arith.constant 0 : i32
    %c0_i32_0 = arith.constant 0 : i32
    %c0_i32_1 = arith.constant 0 : i32
    return %c0_i32, %c0_i32_0 : i32, i32
  }
  func.func @transform_5(%arg0: i32) -> (i32, i32) {
    %c0_i32 = arith.constant 0 : i32
    %c0_i32_0 = arith.constant 0 : i32
    return %arg0, %c0_i32 : i32, i32
  }
}

</mosaic_0001>

<llo_original>
// kernel: tpu_custom_call.1
$region0: #{tpu_custom_call.1}
  #allocation0 [shape = 'u32[]', space=smem, size = 0x4, offset = 0x4, fixed_abs, tag = 'smem constant byte address 0x4 - core index']
  #allocation1 [shape = 'u32[144,128]{1,0:T(1,128)}', space=vmem, size = 0x12000, scoped, tag = 'internal scratch']
  %s0 = inlined_call_operand.hbm [shape: f32[8,32], index: 0, kind: input, shape index: {}]
  %s1 = inlined_call_operand.hbm [shape: bf16[32,128], index: 1, kind: input, shape index: {}]
  %s2 = inlined_call_operand.vmem [shape: f32[1,128], index: 2, kind: input, shape index: {}]
  %s3 = inlined_call_operand.hbm [shape: bf16[128,128], index: 3, kind: input, shape index: {}]
  %s4 = inlined_call_operand.vmem [shape: f32[1,128], index: 4, kind: input, shape index: {}]
  %s5 = inlined_call_operand.hbm [shape: f32[8,128], index: 5, kind: output, shape index: {}]
  %s6 = sld [smem:[#allocation0]]
  $region42: #{tpu_custom_call.1} parent=0
    _
  %s8 = ssub.s32 1, %s6
  %s9 = scalar_select 0, %s8, %s6
  $region1: #{tpu_custom_call.1} parent=0
    #allocation2 [shape = 'u8[4096]{0}', space=vmem, size = 0x1000, scoped, tag = 'input window, operand 0, single buffered']
    #allocation3 [shape = 's32[1]{0}', space=sflag, size = 0x4, scoped, tag = 'scoped memory for tpu_custom_call.1']
    #allocation4 [shape = 's32[1]{0}', space=sflag, size = 0x4, scoped, tag = 'scoped memory for tpu_custom_call.1']
    #allocation5 [shape = 'u8[8192]{0}', space=vmem, size = 0x2000, scoped, tag = 'input window, operand 1, single buffered']
    #allocation6 [shape = 's32[1]{0}', space=sflag, size = 0x4, scoped, tag = 'scoped memory for tpu_custom_call.1']
    #allocation7 [shape = 'u8[32768]{0}', space=vmem, size = 0x8000, scoped, tag = 'input window, operand 3, single buffered']
    #allocation8 [shape = 'u8[4096]{0}', space=vmem, size = 0x1000, scoped, tag = 'output window, operand 0, single buffered']
    %10 = vsyncpa [#allocation3], 0
    %11 = vsyncpa [#allocation6], 0
    %12 = vsyncpa [#allocation4], 0
    // Predicated region
    $region2: #{tpu_custom_call.1} parent=1 // pred_check
      _
    $region3: #{tpu_custom_call.1} parent=1 // pred_check_branch
      %14 = sbr.rel (0) target = $region5
    $region4: #{tpu_custom_call.1} parent=1 // pred_region
      %s16 = ssub.s32 128, 128
      %17 = vsyncadd [#allocation3], %s16
      %s19 = sshll.u32 [#allocation2], 4
      %s20 = int_to_ptr.vmem [resolvable:$true] %s19
      %22 = dma.hbm_to_vmem [thread:$0]  %s0, 128, %s20, [#allocation3]
    $region5: #{tpu_custom_call.1} parent=1 // pred_fallthru
      _
    // Predicated region
    $region6: #{tpu_custom_call.1} parent=1 // pred_check
      _
    $region7: #{tpu_custom_call.1} parent=1 // pred_check_branch
      %24 = sbr.rel (0) target = $region9
    $region8: #{tpu_custom_call.1} parent=1 // pred_region
      %s26 = ssub.s32 256, 256
      %27 = vsyncadd [#allocation6], %s26
      %s28 = sshll.u32 [#allocation5], 4
      %s29 = int_to_ptr.vmem [resolvable:$true] %s28
      %34 = dma.hbm_to_vmem [thread:$0]  %s1, 256, %s29, [#allocation6], 64, 64, 4
    $region9: #{tpu_custom_call.1} parent=1 // pred_fallthru
      _
    // Predicated region
    $region10: #{tpu_custom_call.1} parent=1 // pred_check
      _
    $region11: #{tpu_custom_call.1} parent=1 // pred_check_branch
      %36 = sbr.rel (0) target = $region13
    $region12: #{tpu_custom_call.1} parent=1 // pred_region
      _
    $region13: #{tpu_custom_call.1} parent=1 // pred_fallthru
      _
    // Predicated region
    $region14: #{tpu_custom_call.1} parent=1 // pred_check
      _
    $region15: #{tpu_custom_call.1} parent=1 // pred_check_branch
      %38 = sbr.rel (0) target = $region17
    $region16: #{tpu_custom_call.1} parent=1 // pred_region
      %s40 = ssub.s32 1024, 1024
      %41 = vsyncadd [#allocation6], %s40
      %s42 = sshll.u32 [#allocation7], 4
      %s43 = int_to_ptr.vmem [resolvable:$true] %s42
      %48 = dma.hbm_to_vmem [thread:$0]  %s3, 1024, %s43, [#allocation6], 64, 64, 4
    $region17: #{tpu_custom_call.1} parent=1 // pred_fallthru
      _
    // Predicated region
    $region18: #{tpu_custom_call.1} parent=1 // pred_check
      _
    $region19: #{tpu_custom_call.1} parent=1 // pred_check_branch
      %50 = sbr.rel (0) target = $region21
    $region20: #{tpu_custom_call.1} parent=1 // pred_region
      _
    $region21: #{tpu_custom_call.1} parent=1 // pred_fallthru
      _
    // Predicated region
    $region22: #{tpu_custom_call.1} parent=1 // pred_check
      _
    $region23: #{tpu_custom_call.1} parent=1 // pred_check_branch
      %52 = sbr.rel (0) target = $region25
    $region24: #{tpu_custom_call.1} parent=1 // pred_region
      %53 = dma.done [#allocation3], 128
    $region25: #{tpu_custom_call.1} parent=1 // pred_fallthru
      _
    // Predicated region
    $region26: #{tpu_custom_call.1} parent=1 // pred_check
      _
    $region27: #{tpu_custom_call.1} parent=1 // pred_check_branch
      %55 = sbr.rel (0) target = $region29
    $region28: #{tpu_custom_call.1} parent=1 // pred_region
      %56 = dma.done [#allocation6], 256
    $region29: #{tpu_custom_call.1} parent=1 // pred_fallthru
      _
    // Predicated region
    $region30: #{tpu_custom_call.1} parent=1 // pred_check
      _
    $region31: #{tpu_custom_call.1} parent=1 // pred_check_branch
      %58 = sbr.rel (0) target = $region33
    $region32: #{tpu_custom_call.1} parent=1 // pred_region
      %59 = dma.done [#allocation6], 1024
    $region33: #{tpu_custom_call.1} parent=1 // pred_fallthru
      _
    %v61 = vld [vmem:[#allocation2] sm:$0xff]
    %v62 = vpack.c.bf16 %v61, %v61
    %v63 = vld [vmem:[#allocation5] sm:$0xf]
    %v64 = vld [vmem:[#allocation5 + $0x4] sm:$0xf]
    %v65 = vld [vmem:[#allocation5 + $0x8] sm:$0xf]
    %v66 = vld [vmem:[#allocation5 + $0xc] sm:$0xf]
    %v67 = vld [vmem:[%s2] sm:$0x1]
    %v69 = vlaneseq
    %v70 = vshrl.u32 %v69, 7
    %v71 = vsub.s32 0, %v70
    %v72 = vrot.slane %v67, %v71
    %v78 = vunpack.c.l.b16 %v63
    %v79 = vunpack.c.l.b16 %v64
    %v80 = vunpack.c.l.b16 %v65
    %v81 = vunpack.c.l.b16 %v66
    %v82 = vpack.c.b16 %v79, %v78
    %v83 = vpack.c.b16 %v81, %v80
    %vm86 = vcmask 261120
    %v88 = vsel %vm86, %v62, 0
    %90 = vmatprep.subr.bf16.mxu0 0
    %91 = vmatpush1.bf16.msra.mxu0 %v82
    %92 = vmatprep.subr.bf16.mxu0 0
    %93 = vmatpush1.bf16.msra.mxu0 %v83
    %94 = vmatprep.subr.bf16.mxu0 0
    %95 = vmatpush1.bf16.msra.mxu0 0
    %96 = vmatprep.subr.bf16.mxu0 0
    %97 = vmatpush1.bf16.msra.mxu0 0
    %98 = vmatprep.subr.bf16.mxu0 0
    %99 = vmatpush1.bf16.msra.mxu0 0
    %100 = vmatprep.subr.bf16.mxu0 0
    %101 = vmatpush1.bf16.msra.mxu0 0
    %102 = vmatprep.subr.bf16.mxu0 0
    %103 = vmatpush1.bf16.msra.mxu0 0
    %104 = vmatprep.subr.bf16.mxu0 0
    %105 = vmatpush1.bf16.msra.mxu0 0
    %106 = vmatprep.subr.bf16.mxu0 0
    %107 = vmatpush1.bf16.msra.mxu0 0
    %108 = vmatprep.subr.bf16.mxu0 0
    %109 = vmatpush1.bf16.msra.mxu0 0
    %110 = vmatprep.subr.bf16.mxu0 0
    %111 = vmatpush1.bf16.msra.mxu0 0
    %112 = vmatprep.subr.bf16.mxu0 0
    %113 = vmatpush1.bf16.msra.mxu0 0
    %114 = vmatprep.subr.bf16.mxu0 0
    %115 = vmatpush1.bf16.msra.mxu0 0
    %116 = vmatprep.subr.bf16.mxu0 0
    %117 = vmatpush1.bf16.msra.mxu0 0
    %118 = vmatprep.subr.bf16.mxu0 0
    %119 = vmatpush1.bf16.msra.mxu0 0
    %120 = vmatprep.subr.bf16.mxu0 0
    %121 = vmatpush1.bf16.msra.mxu0 0
    %122 = vmatprep.mubr.bf16.mxu0 0
    %123 = vmatmul.mubr.bf16.gmra.mrb[0].mxu0 %v88
    %v124 = vpop.f32.mrb[0].mxu0
    %v125 = vadd.f32 %v72, %v124
    %v126 = vpop.f32.mrb[0].mxu0
    %v127 = vpop.f32.mrb[0].mxu0
    %v128 = vpop.f32.mrb[0].mxu0
    %129 = vdwg.mxu0
    %v130 = vmul.f32 %v125, 0.5
    %v131 = vtanh.pop %v130
    %v132 = vmul.f32 %v131, 0.5
    %v133 = vadd.f32 %v132, 0.5
    %v134 = vlaneseq
    %v135 = vand.u32 %v134, 127
    %vm136 = vcmp.lt.s32.totalorder %v135, 16
    %v137 = vsel %vm136, %v133, 0.0
    %v138 = vpack.c.bf16 %v137, %v137
    %v139 = vld [vmem:[#allocation7] sm:$0xf]
    %v140 = vld [vmem:[#allocation7 + $0x4] sm:$0xf]
    %v141 = vld [vmem:[#allocation7 + $0x8] sm:$0xf]
    %v142 = vld [vmem:[#allocation7 + $0xc] sm:$0xf]
    %v143 = vld [vmem:[#allocation7 + $0x10] sm:$0xf]
    %v144 = vld [vmem:[#allocation7 + $0x14] sm:$0xf]
    %v145 = vld [vmem:[#allocation7 + $0x18] sm:$0xf]
    %v146 = vld [vmem:[#allocation7 + $0x1c] sm:$0xf]
    %v147 = vld [vmem:[#allocation7 + $0x20] sm:$0xf]
    %v148 = vld [vmem:[#allocation7 + $0x24] sm:$0xf]
    %v149 = vld [vmem:[#allocation7 + $0x28] sm:$0xf]
    %v150 = vld [vmem:[#allocation7 + $0x2c] sm:$0xf]
    %v151 = vld [vmem:[#allocation7 + $0x30] sm:$0xf]
    %v152 = vld [vmem:[#allocation7 + $0x34] sm:$0xf]
    %v153 = vld [vmem:[#allocation7 + $0x38] sm:$0xf]
    %v154 = vld [vmem:[#allocation7 + $0x3c] sm:$0xf]
    %v155 = vld [vmem:[%s4] sm:$0x1]
    %v157 = vlaneseq
    %v158 = vshrl.u32 %v157, 7
    %v159 = vsub.s32 0, %v158
    %v160 = vrot.slane %v155, %v159
    %v178 = vunpack.c.l.b16 %v139
    %v179 = vunpack.c.l.b16 %v140
    %v180 = vunpack.c.l.b16 %v141
    %v181 = vunpack.c.l.b16 %v142
    %v182 = vunpack.c.l.b16 %v143
    %v183 = vunpack.c.l.b16 %v144
    %v184 = vunpack.c.l.b16 %v145
    %v185 = vunpack.c.l.b16 %v146
    %v186 = vunpack.c.l.b16 %v147
    %v187 = vunpack.c.l.b16 %v148
    %v188 = vunpack.c.l.b16 %v149
    %v189 = vunpack.c.l.b16 %v150
    %v190 = vunpack.c.l.b16 %v151
    %v191 = vunpack.c.l.b16 %v152
    %v192 = vunpack.c.l.b16 %v153
    %v193 = vunpack.c.l.b16 %v154
    %v194 = vpack.c.b16 %v179, %v178
    %v195 = vpack.c.b16 %v181, %v180
    %v196 = vpack.c.b16 %v183, %v182
    %v197 = vpack.c.b16 %v185, %v184
    %v198 = vpack.c.b16 %v187, %v186
    %v199 = vpack.c.b16 %v189, %v188
    %v200 = vpack.c.b16 %v191, %v190
    %v201 = vpack.c.b16 %v193, %v192
    %210 = vmatprep.subr.bf16.mxu0 0
    %211 = vmatpush1.bf16.msra.mxu0 %v194
    %212 = vmatprep.subr.bf16.mxu0 0
    %213 = vmatpush1.bf16.msra.mxu0 %v195
    %214 = vmatprep.subr.bf16.mxu0 0
    %215 = vmatpush1.bf16.msra.mxu0 %v196
    %216 = vmatprep.subr.bf16.mxu0 0
    %217 = vmatpush1.bf16.msra.mxu0 %v197
    %218 = vmatprep.subr.bf16.mxu0 0
    %219 = vmatpush1.bf16.msra.mxu0 %v198
    %220 = vmatprep.subr.bf16.mxu0 0
    %221 = vmatpush1.bf16.msra.mxu0 %v199
    %222 = vmatprep.subr.bf16.mxu0 0
    %223 = vmatpush1.bf16.msra.mxu0 %v200
    %224 = vmatprep.subr.bf16.mxu0 0
    %225 = vmatpush1.bf16.msra.mxu0 %v201
    %226 = vmatprep.subr.bf16.mxu0 0
    %227 = vmatpush1.bf16.msra.mxu0 0
    %228 = vmatprep.subr.bf16.mxu0 0
    %229 = vmatpush1.bf16.msra.mxu0 0
    %230 = vmatprep.subr.bf16.mxu0 0
    %231 = vmatpush1.bf16.msra.mxu0 0
    %232 = vmatprep.subr.bf16.mxu0 0
    %233 = vmatpush1.bf16.msra.mxu0 0
    %234 = vmatprep.subr.bf16.mxu0 0
    %235 = vmatpush1.bf16.msra.mxu0 0
    %236 = vmatprep.subr.bf16.mxu0 0
    %237 = vmatpush1.bf16.msra.mxu0 0
    %238 = vmatprep.subr.bf16.mxu0 0
    %239 = vmatpush1.bf16.msra.mxu0 0
    %240 = vmatprep.subr.bf16.mxu0 0
    %241 = vmatpush1.bf16.msra.mxu0 0
    %242 = vmatprep.mubr.bf16.mxu0 0
    %243 = vmatmul.mubr.bf16.gmra.mrb[0].mxu0 %v138
    %v244 = vpop.f32.mrb[0].mxu0
    %v245 = vadd.f32 %v160, %v244
    %v246 = vpop.f32.mrb[0].mxu0
    %v247 = vpop.f32.mrb[0].mxu0
    %v248 = vpop.f32.mrb[0].mxu0
    %249 = vdwg.mxu0
    %vm250 = vcmp.lt.s32.totalorder %v135, 4
    %v251 = vsel %vm250, %v245, -1e+30
    %252 = vmax.xlane.f32.xlu0 %v251
    %v253 = vpop.xlane.xlu0 %252
    %v254 = vsub.f32 %v251, %v253
    %v255 = vmul.f32 %v254, 1.442695
    %v256 = vpow.pop %v255
    %257 = vadd.xlane.f32.xlu0 %v256
    %v258 = vpop.xlane.xlu0 %257
    %v259 = vlog2.pop %v258
    %v260 = vmul.f32 %v259, 0.6931472
    %v261 = vsub.f32 %v254, %v260
    %262 = vst [vmem:[#allocation8] sm:$0xff] %v261
    // Predicated region
    $region34: #{tpu_custom_call.1} parent=1 // pred_check
      _
    $region35: #{tpu_custom_call.1} parent=1 // pred_check_branch
      %264 = sbr.rel (0) target = $region37
    $region36: #{tpu_custom_call.1} parent=1 // pred_region
      %s266 = ssub.s32 128, 128
      %267 = vsyncadd [#allocation4], %s266
      %s269 = sshll.u32 [#allocation8], 4
      %s270 = int_to_ptr.vmem [resolvable:$true] %s269
      %272 = dma.vmem_to_hbm [thread:$0]  %s270, 128, %s5, [#allocation4]
    $region37: #{tpu_custom_call.1} parent=1 // pred_fallthru
      _
    // Predicated region
    $region38: #{tpu_custom_call.1} parent=1 // pred_check
      _
    $region39: #{tpu_custom_call.1} parent=1 // pred_check_branch
      %274 = sbr.rel (0) target = $region41
    $region40: #{tpu_custom_call.1} parent=1 // pred_region
      %275 = dma.done [#allocation4], 128
    $region41: #{tpu_custom_call.1} parent=1 // pred_fallthru
      _
    %276 = vsyncpa [#allocation3], 1
    %277 = vsyncpa [#allocation6], 1
    %278 = vsyncpa [#allocation4], 1

// kernel: tpu_custom_call.1
$region0: #{tpu_custom_call.1}
  #allocation0 [shape = 'u32[]', space=smem, size = 0x4, offset = 0x4, fixed_abs, tag = 'smem constant byte address 0x4 - core index']
  #allocation1 [shape = 'u32[144,128]{1,0:T(1,128)}', space=vmem, size = 0x12000, scoped, tag = 'internal scratch']
  %s0 = inlined_call_operand.hbm [shape: f32[8,32], index: 0, kind: input, shape index: {}]
  %s1 = inlined_call_operand.hbm [shape: bf16[32,128], index: 1, kind: input, shape index: {}]
  %s2 = inlined_call_operand.vmem [shape: f32[1,128], index: 2, kind: input, shape index: {}]
  %s3 = inlined_call_operand.hbm [shape: bf16[128,128], index: 3, kind: input, shape index: {}]
  %s4 = inlined_call_operand.vmem [shape: f32[1,128], index: 4, kind: input, shape index: {}]
  %s5 = inlined_call_operand.hbm [shape: f32[8,128], index: 5, kind: output, shape index: {}]
  %s6 = sld [smem:[#allocation0]]
  $region42: #{tpu_custom_call.1} parent=0
    _
  %s8 = ssub.s32 1, %s6
  %s9 = scalar_select 0, %s8, %s6
  $region1: #{tpu_custom_call.1} parent=0
    #allocation2 [shape = 'u8[4096]{0}', space=vmem, size = 0x1000, scoped, tag = 'input window, operand 0, single buffered']
    #allocation3 [shape = 's32[1]{0}', space=sflag, size = 0x4, scoped, tag = 'scoped memory for tpu_custom_call.1']
    #allocation4 [shape = 's32[1]{0}', space=sflag, size = 0x4, scoped, tag = 'scoped memory for tpu_custom_call.1']
    #allocation5 [shape = 'u8[8192]{0}', space=vmem, size = 0x2000, scoped, tag = 'input window, operand 1, single buffered']
    #allocation6 [shape = 's32[1]{0}', space=sflag, size = 0x4, scoped, tag = 'scoped memory for tpu_custom_call.1']
    #allocation7 [shape = 'u8[32768]{0}', space=vmem, size = 0x8000, scoped, tag = 'input window, operand 3, single buffered']
    #allocation8 [shape = 'u8[4096]{0}', space=vmem, size = 0x1000, scoped, tag = 'output window, operand 0, single buffered']
    %10 = vsyncpa [#allocation3], 0
    %11 = vsyncpa [#allocation6], 0
    %12 = vsyncpa [#allocation4], 0
    // Predicated region
    $region2: #{tpu_custom_call.1} parent=1 // pred_check
      _
    $region3: #{tpu_custom_call.1} parent=1 // pred_check_branch
      %14 = sbr.rel (0) target = $region5
    $region4: #{tpu_custom_call.1} parent=1 // pred_region
      %s16 = ssub.s32 128, 128
      %17 = vsyncadd [#allocation3], %s16
      %s19 = sshll.u32 [#allocation2], 4
      %s20 = int_to_ptr.vmem [resolvable:$true] %s19
      %22 = dma.hbm_to_vmem [thread:$0]  %s0, 128, %s20, [#allocation3]
    $region5: #{tpu_custom_call.1} parent=1 // pred_fallthru
      _
    // Predicated region
    $region6: #{tpu_custom_call.1} parent=1 // pred_check
      _
    $region7: #{tpu_custom_call.1} parent=1 // pred_check_branch
      %24 = sbr.rel (0) target = $region9
    $region8: #{tpu_custom_call.1} parent=1 // pred_region
      %s26 = ssub.s32 256, 256
      %27 = vsyncadd [#allocation6], %s26
      %s28 = sshll.u32 [#allocation5], 4
      %s29 = int_to_ptr.vmem [resolvable:$true] %s28
      %34 = dma.hbm_to_vmem [thread:$0]  %s1, 256, %s29, [#allocation6], 64, 64, 4
    $region9: #{tpu_custom_call.1} parent=1 // pred_fallthru
      _
    // Predicated region
    $region10: #{tpu_custom_call.1} parent=1 // pred_check
      _
    $region11: #{tpu_custom_call.1} parent=1 // pred_check_branch
      %36 = sbr.rel (0) target = $region13
    $region12: #{tpu_custom_call.1} parent=1 // pred_region
      _
    $region13: #{tpu_custom_call.1} parent=1 // pred_fallthru
      _
    // Predicated region
    $region14: #{tpu_custom_call.1} parent=1 // pred_check
      _
    $region15: #{tpu_custom_call.1} parent=1 // pred_check_branch
      %38 = sbr.rel (0) target = $region17
    $region16: #{tpu_custom_call.1} parent=1 // pred_region
      %s40 = ssub.s32 1024, 1024
      %41 = vsyncadd [#allocation6], %s40
      %s42 = sshll.u32 [#allocation7], 4
      %s43 = int_to_ptr.vmem [resolvable:$true] %s42
      %48 = dma.hbm_to_vmem [thread:$0]  %s3, 1024, %s43, [#allocation6], 64, 64, 4
    $region17: #{tpu_custom_call.1} parent=1 // pred_fallthru
      _
    // Predicated region
    $region18: #{tpu_custom_call.1} parent=1 // pred_check
      _
    $region19: #{tpu_custom_call.1} parent=1 // pred_check_branch
      %50 = sbr.rel (0) target = $region21
    $region20: #{tpu_custom_call.1} parent=1 // pred_region
      _
    $region21: #{tpu_custom_call.1} parent=1 // pred_fallthru
      _
    // Predicated region
    $region22: #{tpu_custom_call.1} parent=1 // pred_check
      _
    $region23: #{tpu_custom_call.1} parent=1 // pred_check_branch
      %52 = sbr.rel (0) target = $region25
    $region24: #{tpu_custom_call.1} parent=1 // pred_region
      %53 = dma.done [#allocation3], 128
    $region25: #{tpu_custom_call.1} parent=1 // pred_fallthru
      _
    // Predicated region
    $region26: #{tpu_custom_call.1} parent=1 // pred_check
      _
    $region27: #{tpu_custom_call.1} parent=1 // pred_check_branch
      %55 = sbr.rel (0) target = $region29
    $region28: #{tpu_custom_call.1} parent=1 // pred_region
      %56 = dma.done [#allocation6], 256
    $region29: #{tpu_custom_call.1} parent=1 // pred_fallthru
      _
    // Predicated region
    $region30: #{tpu_custom_call.1} parent=1 // pred_check
      _
    $region31: #{tpu_custom_call.1} parent=1 // pred_check_branch
      %58 = sbr.rel (0) target = $region33
    $region32: #{tpu_custom_call.1} parent=1 // pred_region
      %59 = dma.done [#allocation6], 1024
    $region33: #{tpu_custom_call.1} parent=1 // pred_fallthru
      _
    %v61 = vld [vmem:[#allocation2] sm:$0xff]
    %v62 = vpack.c.bf16 %v61, %v61
    %v63 = vld [vmem:[#allocation5] sm:$0xf]
    %v64 = vld [vmem:[#allocation5 + $0x4] sm:$0xf]
    %v65 = vld [vmem:[#allocation5 + $0x8] sm:$0xf]
    %v66 = vld [vmem:[#allocation5 + $0xc] sm:$0xf]
    %v67 = vld [vmem:[%s2] sm:$0x1]
    %v69 = vlaneseq
    %v70 = vshrl.u32 %v69, 7
    %v71 = vsub.s32 0, %v70
    %v72 = vrot.slane %v67, %v71
    %v78 = vunpack.c.l.b16 %v63
    %v79 = vunpack.c.l.b16 %v64
    %v80 = vunpack.c.l.b16 %v65
    %v81 = vunpack.c.l.b16 %v66
    %v82 = vpack.c.b16 %v79, %v78
    %v83 = vpack.c.b16 %v81, %v80
    %vm86 = vcmask 261120
    %v88 = vsel %vm86, %v62, 0
    %90 = vmatprep.subr.bf16.mxu0 0
    %91 = vmatpush1.bf16.msra.mxu0 %v82
    %92 = vmatprep.subr.bf16.mxu0 0
    %93 = vmatpush1.bf16.msra.mxu0 %v83
    %94 = vmatprep.subr.bf16.mxu0 0
    %95 = vmatpush1.bf16.msra.mxu0 0
    %96 = vmatprep.subr.bf16.mxu0 0
    %97 = vmatpush1.bf16.msra.mxu0 0
    %98 = vmatprep.subr.bf16.mxu0 0
    %99 = vmatpush1.bf16.msra.mxu0 0
    %100 = vmatprep.subr.bf16.mxu0 0
    %101 = vmatpush1.bf16.msra.mxu0 0
    %102 = vmatprep.subr.bf16.mxu0 0
    %103 = vmatpush1.bf16.msra.mxu0 0
    %104 = vmatprep.subr.bf16.mxu0 0
    %105 = vmatpush1.bf16.msra.mxu0 0
    %106 = vmatprep.subr.bf16.mxu0 0
    %107 = vmatpush1.bf16.msra.mxu0 0
    %108 = vmatprep.subr.bf16.mxu0 0
    %109 = vmatpush1.bf16.msra.mxu0 0
    %110 = vmatprep.subr.bf16.mxu0 0
    %111 = vmatpush1.bf16.msra.mxu0 0
    %112 = vmatprep.subr.bf16.mxu0 0
    %113 = vmatpush1.bf16.msra.mxu0 0
    %114 = vmatprep.subr.bf16.mxu0 0
    %115 = vmatpush1.bf16.msra.mxu0 0
    %116 = vmatprep.subr.bf16.mxu0 0
    %117 = vmatpush1.bf16.msra.mxu0 0
    %118 = vmatprep.subr.bf16.mxu0 0
    %119 = vmatpush1.bf16.msra.mxu0 0
    %120 = vmatprep.subr.bf16.mxu0 0
    %121 = vmatpush1.bf16.msra.mxu0 0
    %122 = vmatprep.mubr.bf16.mxu0 0
    %123 = vmatmul.mubr.bf16.gmra.mrb[0].mxu0 %v88
    %v124 = vpop.f32.mrb[0].mxu0
    %v125 = vadd.f32 %v72, %v124
    %v126 = vpop.f32.mrb[0].mxu0
    %v127 = vpop.f32.mrb[0].mxu0
    %v128 = vpop.f32.mrb[0].mxu0
    %129 = vdwg.mxu0
    %v130 = vmul.f32 %v125, 0.5
    %v131 = vtanh.pop %v130
    %v132 = vmul.f32 %v131, 0.5
    %v133 = vadd.f32 %v132, 0.5
    %v134 = vlaneseq
    %v135 = vand.u32 %v134, 127
    %vm136 = vcmp.lt.s32.totalorder %v135, 16
    %v137 = vsel %vm136, %v133, 0.0
    %v138 = vpack.c.bf16 %v137, %v137
    %v139 = vld [vmem:[#allocation7] sm:$0xf]
    %v140 = vld [vmem:[#allocation7 + $0x4] sm:$0xf]
    %v141 = vld [vmem:[#allocation7 + $0x8] sm:$0xf]
    %v142 = vld [vmem:[#allocation7 + $0xc] sm:$0xf]
    %v143 = vld [vmem:[#allocation7 + $0x10] sm:$0xf]
    %v144 = vld [vmem:[#allocation7 + $0x14] sm:$0xf]
    %v145 = vld [vmem:[#allocation7 + $0x18] sm:$0xf]
    %v146 = vld [vmem:[#allocation7 + $0x1c] sm:$0xf]
    %v147 = vld [vmem:[#allocation7 + $0x20] sm:$0xf]
    %v148 = vld [vmem:[#allocation7 + $0x24] sm:$0xf]
    %v149 = vld [vmem:[#allocation7 + $0x28] sm:$0xf]
    %v150 = vld [vmem:[#allocation7 + $0x2c] sm:$0xf]
    %v151 = vld [vmem:[#allocation7 + $0x30] sm:$0xf]
    %v152 = vld [vmem:[#allocation7 + $0x34] sm:$0xf]
    %v153 = vld [vmem:[#allocation7 + $0x38] sm:$0xf]
    %v154 = vld [vmem:[#allocation7 + $0x3c] sm:$0xf]
    %v155 = vld [vmem:[%s4] sm:$0x1]
    %v157 = vlaneseq
    %v158 = vshrl.u32 %v157, 7
    %v159 = vsub.s32 0, %v158
    %v160 = vrot.slane %v155, %v159
    %v178 = vunpack.c.l.b16 %v139
    %v179 = vunpack.c.l.b16 %v140
    %v180 = vunpack.c.l.b16 %v141
    %v181 = vunpack.c.l.b16 %v142
    %v182 = vunpack.c.l.b16 %v143
    %v183 = vunpack.c.l.b16 %v144
    %v184 = vunpack.c.l.b16 %v145
    %v185 = vunpack.c.l.b16 %v146
    %v186 = vunpack.c.l.b16 %v147
    %v187 = vunpack.c.l.b16 %v148
    %v188 = vunpack.c.l.b16 %v149
    %v189 = vunpack.c.l.b16 %v150
    %v190 = vunpack.c.l.b16 %v151
    %v191 = vunpack.c.l.b16 %v152
    %v192 = vunpack.c.l.b16 %v153
    %v193 = vunpack.c.l.b16 %v154
    %v194 = vpack.c.b16 %v179, %v178
    %v195 = vpack.c.b16 %v181, %v180
    %v196 = vpack.c.b16 %v183, %v182
    %v197 = vpack.c.b16 %v185, %v184
    %v198 = vpack.c.b16 %v187, %v186
    %v199 = vpack.c.b16 %v189, %v188
    %v200 = vpack.c.b16 %v191, %v190
    %v201 = vpack.c.b16 %v193, %v192
    %210 = vmatprep.subr.bf16.mxu0 0
    %211 = vmatpush1.bf16.msra.mxu0 %v194
    %212 = vmatprep.subr.bf16.mxu0 0
    %213 = vmatpush1.bf16.msra.mxu0 %v195
    %214 = vmatprep.subr.bf16.mxu0 0
    %215 = vmatpush1.bf16.msra.mxu0 %v196
    %216 = vmatprep.subr.bf16.mxu0 0
    %217 = vmatpush1.bf16.msra.mxu0 %v197
    %218 = vmatprep.subr.bf16.mxu0 0
    %219 = vmatpush1.bf16.msra.mxu0 %v198
    %220 = vmatprep.subr.bf16.mxu0 0
    %221 = vmatpush1.bf16.msra.mxu0 %v199
    %222 = vmatprep.subr.bf16.mxu0 0
    %223 = vmatpush1.bf16.msra.mxu0 %v200
    %224 = vmatprep.subr.bf16.mxu0 0
    %225 = vmatpush1.bf16.msra.mxu0 %v201
    %226 = vmatprep.subr.bf16.mxu0 0
    %227 = vmatpush1.bf16.msra.mxu0 0
    %228 = vmatprep.subr.bf16.mxu0 0
    %229 = vmatpush1.bf16.msra.mxu0 0
    %230 = vmatprep.subr.bf16.mxu0 0
    %231 = vmatpush1.bf16.msra.mxu0 0
    %232 = vmatprep.subr.bf16.mxu0 0
    %233 = vmatpush1.bf16.msra.mxu0 0
    %234 = vmatprep.subr.bf16.mxu0 0
    %235 = vmatpush1.bf16.msra.mxu0 0
    %236 = vmatprep.subr.bf16.mxu0 0
    %237 = vmatpush1.bf16.msra.mxu0 0
    %238 = vmatprep.subr.bf16.mxu0 0
    %239 = vmatpush1.bf16.msra.mxu0 0
    %240 = vmatprep.subr.bf16.mxu0 0
    %241 = vmatpush1.bf16.msra.mxu0 0
    %242 = vmatprep.mubr.bf16.mxu0 0
    %243 = vmatmul.mubr.bf16.gmra.mrb[0].mxu0 %v138
    %v244 = vpop.f32.mrb[0].mxu0
    %v245 = vadd.f32 %v160, %v244
    %v246 = vpop.f32.mrb[0].mxu0
    %v247 = vpop.f32.mrb[0].mxu0
    %v248 = vpop.f32.mrb[0].mxu0
    %249 = vdwg.mxu0
    %vm250 = vcmp.lt.s32.totalorder %v135, 4
    %v251 = vsel %vm250, %v245, -1e+30
    %252 = vmax.xlane.f32.xlu0 %v251
    %v253 = vpop.xlane.xlu0 %252
    %v254 = vsub.f32 %v251, %v253
    %v255 = vmul.f32 %v254, 1.442695
    %v256 = vpow.pop %v255
    %257 = vadd.xlane.f32.xlu0 %v256
    %v258 = vpop.xlane.xlu0 %257
    %v259 = vlog2.pop %v258
    %v260 = vmul.f32 %v259, 0.6931472
    %v261 = vsub.f32 %v254, %v260
    %262 = vst [vmem:[#allocation8] sm:$0xff] %v261
    // Predicated region
    $region34: #{tpu_custom_call.1} parent=1 // pred_check
      _
    $region35: #{tpu_custom_call.1} parent=1 // pred_check_branch
      %264 = sbr.rel (0) target = $region37
    $region36: #{tpu_custom_call.1} parent=1 // pred_region
      %s266 = ssub.s32 128, 128
      %267 = vsyncadd [#allocation4], %s266
      %s269 = sshll.u32 [#allocation8], 4
      %s270 = int_to_ptr.vmem [resolvable:$true] %s269
      %272 = dma.vmem_to_hbm [thread:$0]  %s270, 128, %s5, [#allocation4]
    $region37: #{tpu_custom_call.1} parent=1 // pred_fallthru
      _
    // Predicated region
    $region38: #{tpu_custom_call.1} parent=1 // pred_check
      _
    $region39: #{tpu_custom_call.1} parent=1 // pred_check_branch
      %274 = sbr.rel (0) target = $region41
    $region40: #{tpu_custom_call.1} parent=1 // pred_region
      %275 = dma.done [#allocation4], 128
    $region41: #{tpu_custom_call.1} parent=1 // pred_fallthru
      _
    %276 = vsyncpa [#allocation3], 1
    %277 = vsyncpa [#allocation6], 1
    %278 = vsyncpa [#allocation4], 1

</llo_original>
